<compile_context>
chip_gen: v5e
topology: v5e:2x2
jax: 0.10.0
libtpu: 0.0.40
codegen_flags: <defaults>
</compile_context>

<pallas_src>
import functools

import jax
import jax.numpy as jnp
from jax import lax
from jax.experimental import pallas as pl
from jax.experimental.pallas import tpu as pltpu


def _ffn_kernel(x_ref, w1_ref, b1_ref, w2_ref, b2_ref, g_ref, beta_ref,
                o_ref, acc_ref, *, eps, x_matmul_dtype):
    k = pl.program_id(1)
    nk = pl.num_programs(1)

    x = x_ref[...]                                   # (TM, d_in)
    xm = x if x_matmul_dtype is None else x.astype(x_matmul_dtype)

    # h = relu(x @ W1t_tile + b1_tile)  -> (TM, TK), f32 accumulation on MXU.
    h = lax.dot_general(
        xm, w1_ref[...],
        dimension_numbers=(((1,), (0,)), ((), ())),
        preferred_element_type=jnp.float32,
    )
    h = jnp.maximum(h + b1_ref[...].astype(jnp.float32), 0.0)

    # partial fc2: h @ W2t_tile -> (TM, d_in), accumulated across the d_hid axis.
    w2 = w2_ref[...]
    part = lax.dot_general(
        h.astype(w2.dtype), w2,
        dimension_numbers=(((1,), (0,)), ((), ())),
        preferred_element_type=jnp.float32,
    )

    @pl.when(k == 0)
    def _():
        acc_ref[...] = part

    @pl.when(k > 0)
    def _():
        acc_ref[...] += part

    @pl.when(k == nk - 1)
    def _():
        # dropout: identity in eval mode.  bias2 + residual + LayerNorm, all f32.
        y = acc_ref[...] + b2_ref[...].astype(jnp.float32) + x.astype(jnp.float32)
        d = y.shape[-1]
        s1 = jnp.sum(y, axis=-1, keepdims=True)
        s2 = jnp.sum(y * y, axis=-1, keepdims=True)      # one-pass stats
        mean = s1 * (1.0 / d)
        var = jnp.maximum(s2 * (1.0 / d) - mean * mean, 0.0)
        inv = lax.rsqrt(var + eps)                        # EUP slot
        out = (y - mean) * inv * g_ref[...].astype(jnp.float32) \
              + beta_ref[...].astype(jnp.float32)
        o_ref[...] = out.astype(o_ref.dtype)


def _block_spec(shape, index_map, single_buffer):
    if single_buffer:
        return pl.BlockSpec(shape, index_map, pipeline_mode=pl.Buffered(1))
    return pl.BlockSpec(shape, index_map)


def _pick_tm(M, block_rows):
    """Row tile: multiple of 8, prefer a divisor of M (no padding), target block_rows."""
    target = max(8, (block_rows // 8) * 8)
    if M <= target:
        return M, M                       # single full-extent tile, no padding
    tm = next((t for t in range(target, 7, -8) if M % t == 0), 0)
    if tm:
        return tm, M
    tm = target                           # last resort: pad rows
    return tm, pl.cdiv(M, tm) * tm


def _pick_tk(d_hid, d_in, w_itemsize, weight_budget):
    """d_hid tile: full-resident if it fits the budget, else stream multiples of 128."""
    full_bytes = 2 * d_in * d_hid * w_itemsize          # W1t + W2t resident
    if full_bytes <= weight_budget or d_hid % 128 != 0:
        return d_hid
    for cand in range((d_hid // 128) * 128, 127, -128):
        # double-buffered (d_in, TK) + (TK, d_in) streamed tiles
        if d_hid % cand == 0 and 4 * d_in * cand * w_itemsize <= weight_budget:
            return cand
    return 128


def positionwise_feed_forward(x, w1, b1, w2, b2, gamma, beta, *,
                              eps=1e-6, block_rows=256,
                              matmul_dtype=None, max_weight_bytes=None):
    """x: (..., d_in); w1: (d_hid, d_in); b1: (d_hid,); w2: (d_in, d_hid); b2: (d_in,);
       gamma, beta: (d_in,).  Returns layer_norm(fc2(relu(fc1(x))) + x), eval-mode dropout."""
    orig_shape = x.shape
    d_in = orig_shape[-1]
    d_hid = w1.shape[0]

    x2 = x.reshape(-1, d_in)
    M = x2.shape[0]

    # ---- tiling -------------------------------------------------------------
    TM, Mp = _pick_tm(M, block_rows)
    if Mp > M:
        x2 = jnp.pad(x2, ((0, Mp - M), (0, 0)))

    # One-time host-side transpose -> native [M,K]x[K,N] matmuls in the kernel.
    w1t = w1.T                                       # (d_in, d_hid)
    w2t = w2.T                                       # (d_hid, d_in)
    if matmul_dtype is not None:
        w1t = w1t.astype(matmul_dtype)
        w2t = w2t.astype(matmul_dtype)

    try:
        vmem_cap = int(pltpu.get_tpu_info().vmem_capacity_bytes)
    except Exception:
        vmem_cap = 64 * 1024 * 1024                  # conservative (v7x-sized) fallback

    w_isz = jnp.dtype(w1t.dtype).itemsize
    x_isz = jnp.dtype(x.dtype).itemsize

    weight_budget = (int(max_weight_bytes) if max_weight_bytes is not None
                     else int(0.45 * vmem_cap))
    TK = _pick_tk(d_hid, d_in, w_isz, weight_budget)
    nk = d_hid // TK
    grid = (Mp // TM, nk)

    # VMEM working-set estimate (conservative: weights counted double-buffered) + headroom.
    est = (
        4 * d_in * TK * w_isz                        # W1t/W2t tiles (x2 buffers)
        + 2 * (TK + 3 * d_in) * 4                    # biases + gamma/beta
        + 4 * TM * d_in * x_isz                      # x + out tiles, double-buffered
        + TM * TK * 4                                # fc1 activation intermediate
        + TM * d_in * 4                              # f32 accumulator scratch
    )
    vmem_limit = int(min(0.75 * vmem_cap, max(1.3 * est + (4 << 20), 32 << 20)))

    b1_2 = b1.reshape(1, d_hid)
    b2_2 = b2.reshape(1, d_in)
    g_2 = gamma.reshape(1, d_in)
    beta_2 = beta.reshape(1, d_in)

    kernel = functools.partial(_ffn_kernel, eps=float(eps), x_matmul_dtype=matmul_dtype)

    def _call(use_single_buffer):
        const_sb = use_single_buffer                 # index_map constant over whole grid
        w_sb = use_single_buffer and (nk == 1)       # weights constant only if not streamed
        in_specs = [
            pl.BlockSpec((TM, d_in), lambda i, k: (i, 0)),           # x rows
            _block_spec((d_in, TK), lambda i, k: (0, k), w_sb),      # W1^T tile
            _block_spec((1, TK), lambda i, k: (0, k), w_sb),         # b1 tile
            _block_spec((TK, d_in), lambda i, k: (k, 0), w_sb),      # W2^T tile
            _block_spec((1, d_in), lambda i, k: (0, 0), const_sb),   # b2
            _block_spec((1, d_in), lambda i, k: (0, 0), const_sb),   # gamma
            _block_spec((1, d_in), lambda i, k: (0, 0), const_sb),   # beta
        ]
        return pl.pallas_call(
            kernel,
            out_shape=jax.ShapeDtypeStruct((Mp, d_in), x.dtype),
            grid=grid,
            in_specs=in_specs,
            out_specs=pl.BlockSpec((TM, d_in), lambda i, k: (i, 0)),
            scratch_shapes=[pltpu.VMEM((TM, d_in), jnp.float32)],
            compiler_params=pltpu.CompilerParams(
                dimension_semantics=("parallel", "arbitrary"),
                vmem_limit_bytes=vmem_limit,
            ),
        )(x2, w1t, b1_2, w2t, b2_2, g_2, beta_2)

    try:
        out = _call(True)
    except Exception:
        # pl.Buffered(1) / pipeline_mode not supported on this jax version: use defaults.
        out = _call(False)

    if Mp > M:
        out = out[:M]
    return out.reshape(orig_shape)


def _reference(x, w1, b1, w2, b2, gamma, beta, eps=1e-6):
    h = jnp.maximum(x @ w1.T + b1, 0.0)
    y = h @ w2.T + b2
    y = y + x                                   # dropout is identity in eval mode
    mean = jnp.mean(y, axis=-1, keepdims=True)
    var = jnp.mean((y - mean) ** 2, axis=-1, keepdims=True)
    return (y - mean) / jnp.sqrt(var + eps) * gamma + beta


def _make_inputs(key, B, S, d_in, d_hid):
    kx, kw1, kb1, kw2, kb2 = jax.random.split(key, 5)
    x = jax.random.normal(kx, (B, S, d_in), dtype=jnp.float32)
    w1 = jax.random.normal(kw1, (d_hid, d_in), dtype=jnp.float32) * 0.1
    b1 = jax.random.normal(kb1, (d_hid,), dtype=jnp.float32) * 0.1
    w2 = jax.random.normal(kw2, (d_in, d_hid), dtype=jnp.float32) * 0.1
    b2 = jax.random.normal(kb2, (d_in,), dtype=jnp.float32) * 0.1
    gamma = jnp.ones((d_in,), dtype=jnp.float32)
    beta = jnp.zeros((d_in,), dtype=jnp.float32)
    return x, w1, b1, w2, b2, gamma, beta


if __name__ == "__main__":
    key = jax.random.PRNGKey(0)
    k1, k2 = jax.random.split(key, 2)

    # Test 1: tiny shapes, fully-resident weights (single k step, single-buffered weights).
    x, w1, b1, w2, b2, g, bt = _make_inputs(k1, B=2, S=8, d_in=32, d_hid=64)
    out = positionwise_feed_forward(x, w1, b1, w2, b2, g, bt)
    out = jax.block_until_ready(out)
    ref = _reference(x, w1, b1, w2, b2, g, bt)
    assert out.shape == x.shape, "shape mismatch (resident path)"
    assert jnp.allclose(out, ref, atol=1e-4, rtol=1e-4), "output mismatch (resident path)"

    # Test 2: force the d_hid-streaming path (2 reduction steps along d_hid).
    x, w1, b1, w2, b2, g, bt = _make_inputs(k2, B=2, S=8, d_in=128, d_hid=256)
    out = positionwise_feed_forward(x, w1, b1, w2, b2, g, bt, max_weight_bytes=1)
    out = jax.block_until_ready(out)
    ref = _reference(x, w1, b1, w2, b2, g, bt)
    assert out.shape == x.shape, "shape mismatch (streaming path)"
    assert jnp.allclose(out, ref, atol=5e-4, rtol=5e-4), "output mismatch (streaming path)"

    print("KERNEL_OK")
</pallas_src>

<mosaic_0001>
module attributes {stable_mosaic.version = 11 : i64} {
  func.func @_ffn_kernel(%arg0: i32, %arg1: i32, %arg2: memref<16x32xf32, #tpu.memory_space<vmem>>, %arg3: memref<32x64xf32, #tpu.memory_space<vmem>>, %arg4: memref<1x64xf32, #tpu.memory_space<vmem>>, %arg5: memref<64x32xf32, #tpu.memory_space<vmem>>, %arg6: memref<1x32xf32, #tpu.memory_space<vmem>>, %arg7: memref<1x32xf32, #tpu.memory_space<vmem>>, %arg8: memref<1x32xf32, #tpu.memory_space<vmem>>, %arg9: memref<16x32xf32, #tpu.memory_space<vmem>>, %arg10: memref<16x32xf32, #tpu.memory_space<vmem>>) attributes {dimension_semantics = [#tpu.dimension_semantics<parallel>, #tpu.dimension_semantics<arbitrary>], iteration_bounds = array<i64: 1, 1>, scalar_prefetch = 0 : i64, scratch_operands = 1 : i64, tpu.core_type = #tpu.core_type<tc>, window_params = [{transform_indices = @transform_0, window_bounds = array<i64: 16, 32>}, {pipeline_mode = #tpu.pipeline_mode<synchronous>, transform_indices = @transform_1, window_bounds = array<i64: 32, 64>}, {pipeline_mode = #tpu.pipeline_mode<synchronous>, transform_indices = @transform_2, window_bounds = array<i64: 1, 64>}, {pipeline_mode = #tpu.pipeline_mode<synchronous>, transform_indices = @transform_3, window_bounds = array<i64: 64, 32>}, {pipeline_mode = #tpu.pipeline_mode<synchronous>, transform_indices = @transform_4, window_bounds = array<i64: 1, 32>}, {pipeline_mode = #tpu.pipeline_mode<synchronous>, transform_indices = @transform_5, window_bounds = array<i64: 1, 32>}, {pipeline_mode = #tpu.pipeline_mode<synchronous>, transform_indices = @transform_6, window_bounds = array<i64: 1, 32>}, {transform_indices = @transform_7, window_bounds = array<i64: 16, 32>}]} {
    %c0 = arith.constant 0 : index
    %c0_0 = arith.constant 0 : index
    %0 = vector.load %arg2[%c0, %c0_0] : memref<16x32xf32, #tpu.memory_space<vmem>>, vector<16x32xf32>
    %c0_1 = arith.constant 0 : index
    %c0_2 = arith.constant 0 : index
    %1 = vector.load %arg3[%c0_1, %c0_2] : memref<32x64xf32, #tpu.memory_space<vmem>>, vector<32x64xf32>
    %cst = arith.constant dense<0.000000e+00> : vector<16x64xf32>
    %2 = tpu.matmul %0, %1, %cst {dimension_numbers = #tpu.dot_dimension_numbers<[1], [0], [0], [1], [0, 0, 1, 1], [], []>} : vector<16x32xf32>, vector<32x64xf32>, vector<16x64xf32> -> vector<16x64xf32>
    %c0_3 = arith.constant 0 : index
    %c0_4 = arith.constant 0 : index
    %3 = vector.load %arg4[%c0_3, %c0_4] : memref<1x64xf32, #tpu.memory_space<vmem>>, vector<1x64xf32>
    %4 = vector.broadcast %3 : vector<1x64xf32> to vector<16x64xf32>
    %5 = arith.addf %2, %4 : vector<16x64xf32>
    %cst_5 = arith.constant 0.000000e+00 : f32
    %6 = vector.broadcast %cst_5 : f32 to vector<16x64xf32>
    %7 = arith.maximumf %5, %6 : vector<16x64xf32>
    %c0_6 = arith.constant 0 : index
    %c0_7 = arith.constant 0 : index
    %8 = vector.load %arg5[%c0_6, %c0_7] : memref<64x32xf32, #tpu.memory_space<vmem>>, vector<64x32xf32>
    %cst_8 = arith.constant dense<0.000000e+00> : vector<16x32xf32>
    %9 = tpu.matmul %7, %8, %cst_8 {dimension_numbers = #tpu.dot_dimension_numbers<[1], [0], [0], [1], [0, 0, 1, 1], [], []>} : vector<16x64xf32>, vector<64x32xf32>, vector<16x32xf32> -> vector<16x32xf32>
    %c0_i32 = arith.constant 0 : i32
    %10 = arith.cmpi eq, %arg1, %c0_i32 : i32
    %11 = arith.extui %10 : i1 to i32
    %c0_i32_9 = arith.constant 0 : i32
    %12 = arith.cmpi ne, %11, %c0_i32_9 : i32
    scf.if %12 {
      %c0_14 = arith.constant 0 : index
      %c0_15 = arith.constant 0 : index
      %19 = vector.load %arg10[%c0_14, %c0_15] : memref<16x32xf32, #tpu.memory_space<vmem>>, vector<16x32xf32>
      tpu.vector_store %arg10[%c0_14, %c0_15], %9 {strides = array<i32>} : memref<16x32xf32, #tpu.memory_space<vmem>>, vector<16x32xf32>,
    } else {
    }
    %c0_i32_10 = arith.constant 0 : i32
    %13 = arith.cmpi sgt, %arg1, %c0_i32_10 : i32
    %14 = arith.extui %13 : i1 to i32
    %c0_i32_11 = arith.constant 0 : i32
    %15 = arith.cmpi ne, %14, %c0_i32_11 : i32
    scf.if %15 {
      %c0_14 = arith.constant 0 : index
      %c0_15 = arith.constant 0 : index
      %19 = vector.load %arg10[%c0_14, %c0_15] : memref<16x32xf32, #tpu.memory_space<vmem>>, vector<16x32xf32>
      %20 = arith.addf %19, %9 : vector<16x32xf32>
      %c0_16 = arith.constant 0 : index
      %c0_17 = arith.constant 0 : index
      %21 = vector.load %arg10[%c0_16, %c0_17] : memref<16x32xf32, #tpu.memory_space<vmem>>, vector<16x32xf32>
      tpu.vector_store %arg10[%c0_16, %c0_17], %20 {strides = array<i32>} : memref<16x32xf32, #tpu.memory_space<vmem>>, vector<16x32xf32>,
    } else {
    }
    %c0_i32_12 = arith.constant 0 : i32
    %16 = arith.cmpi eq, %arg1, %c0_i32_12 : i32
    %17 = arith.extui %16 : i1 to i32
    %c0_i32_13 = arith.constant 0 : i32
    %18 = arith.cmpi ne, %17, %c0_i32_13 : i32
    scf.if %18 {
      %c0_14 = arith.constant 0 : index
      %c0_15 = arith.constant 0 : index
      %19 = vector.load %arg10[%c0_14, %c0_15] : memref<16x32xf32, #tpu.memory_space<vmem>>, vector<16x32xf32>
      %c0_16 = arith.constant 0 : index
      %c0_17 = arith.constant 0 : index
      %20 = vector.load %arg6[%c0_16, %c0_17] : memref<1x32xf32, #tpu.memory_space<vmem>>, vector<1x32xf32>
      %21 = vector.broadcast %20 : vector<1x32xf32> to vector<16x32xf32>
      %22 = arith.addf %19, %21 : vector<16x32xf32>
      %23 = arith.addf %22, %0 : vector<16x32xf32>
      %cst_18 = arith.constant dense<0.000000e+00> : vector<16xf32>
      %24 = vector.multi_reduction <add>, %23, %cst_18 [1] : vector<16x32xf32> to vector<16xf32>
      %25 = vector.shape_cast %24 : vector<16xf32> to vector<16x1xf32>
      %26 = arith.mulf %23, %23 : vector<16x32xf32>
      %cst_19 = arith.constant dense<0.000000e+00> : vector<16xf32>
      %27 = vector.multi_reduction <add>, %26, %cst_19 [1] : vector<16x32xf32> to vector<16xf32>
      %28 = vector.shape_cast %27 : vector<16xf32> to vector<16x1xf32>
      %cst_20 = arith.constant 3.125000e-02 : f32
      %29 = vector.broadcast %cst_20 : f32 to vector<16x1xf32>
      %30 = arith.mulf %25, %29 : vector<16x1xf32>
      %cst_21 = arith.constant 3.125000e-02 : f32
      %31 = vector.broadcast %cst_21 : f32 to vector<16x1xf32>
      %32 = arith.mulf %28, %31 : vector<16x1xf32>
      %33 = arith.mulf %30, %30 : vector<16x1xf32>
      %34 = arith.subf %32, %33 : vector<16x1xf32>
      %cst_22 = arith.constant 0.000000e+00 : f32
      %35 = vector.broadcast %cst_22 : f32 to vector<16x1xf32>
      %36 = arith.maximumf %34, %35 : vector<16x1xf32>
      %cst_23 = arith.constant 9.99999997E-7 : f32
      %37 = vector.broadcast %cst_23 : f32 to vector<16x1xf32>
      %38 = arith.addf %36, %37 : vector<16x1xf32>
      %39 = math.rsqrt %38 : vector<16x1xf32>
      %40 = vector.broadcast %30 : vector<16x1xf32> to vector<16x32xf32>
      %41 = arith.subf %23, %40 : vector<16x32xf32>
      %42 = vector.broadcast %39 : vector<16x1xf32> to vector<16x32xf32>
      %43 = arith.mulf %41, %42 : vector<16x32xf32>
      %c0_24 = arith.constant 0 : index
      %c0_25 = arith.constant 0 : index
      %44 = vector.load %arg7[%c0_24, %c0_25] : memref<1x32xf32, #tpu.memory_space<vmem>>, vector<1x32xf32>
      %45 = vector.broadcast %44 : vector<1x32xf32> to vector<16x32xf32>
      %46 = arith.mulf %43, %45 : vector<16x32xf32>
      %c0_26 = arith.constant 0 : index
      %c0_27 = arith.constant 0 : index
      %47 = vector.load %arg8[%c0_26, %c0_27] : memref<1x32xf32, #tpu.memory_space<vmem>>, vector<1x32xf32>
      %48 = vector.broadcast %47 : vector<1x32xf32> to vector<16x32xf32>
      %49 = arith.addf %46, %48 : vector<16x32xf32>
      %c0_28 = arith.constant 0 : index
      %c0_29 = arith.constant 0 : index
      %50 = vector.load %arg9[%c0_28, %c0_29] : memref<16x32xf32, #tpu.memory_space<vmem>>, vector<16x32xf32>
      tpu.vector_store %arg9[%c0_28, %c0_29], %49 {strides = array<i32>} : memref<16x32xf32, #tpu.memory_space<vmem>>, vector<16x32xf32>,
    } else {
    }
    return
  }
  func.func @transform_0(%arg0: i32, %arg1: i32) -> (i32, i32) {
    %c0_i32 = arith.constant 0 : i32
    %c0_i32_0 = arith.constant 0 : i32
    return %arg0, %c0_i32 : i32, i32
  }
  func.func @transform_1(%arg0: i32, %arg1: i32) -> (i32, i32) {
    %c0_i32 = arith.constant 0 : i32
    %c0_i32_0 = arith.constant 0 : i32
    return %c0_i32, %arg1 : i32, i32
  }
  func.func @transform_2(%arg0: i32, %arg1: i32) -> (i32, i32) {
    %c0_i32 = arith.constant 0 : i32
    %c0_i32_0 = arith.constant 0 : i32
    return %c0_i32, %arg1 : i32, i32
  }
  func.func @transform_3(%arg0: i32, %arg1: i32) -> (i32, i32) {
    %c0_i32 = arith.constant 0 : i32
    %c0_i32_0 = arith.constant 0 : i32
    return %arg1, %c0_i32 : i32, i32
  }
  func.func @transform_4(%arg0: i32, %arg1: i32) -> (i32, i32) {
    %c0_i32 = arith.constant 0 : i32
    %c0_i32_0 = arith.constant 0 : i32
    %c0_i32_1 = arith.constant 0 : i32
    return %c0_i32, %c0_i32_0 : i32, i32
  }
  func.func @transform_5(%arg0: i32, %arg1: i32) -> (i32, i32) {
    %c0_i32 = arith.constant 0 : i32
    %c0_i32_0 = arith.constant 0 : i32
    %c0_i32_1 = arith.constant 0 : i32
    return %c0_i32, %c0_i32_0 : i32, i32
  }
  func.func @transform_6(%arg0: i32, %arg1: i32) -> (i32, i32) {
    %c0_i32 = arith.constant 0 : i32
    %c0_i32_0 = arith.constant 0 : i32
    %c0_i32_1 = arith.constant 0 : i32
    return %c0_i32, %c0_i32_0 : i32, i32
  }
  func.func @transform_7(%arg0: i32, %arg1: i32) -> (i32, i32) {
    %c0_i32 = arith.constant 0 : i32
    %c0_i32_0 = arith.constant 0 : i32
    return %arg0, %c0_i32 : i32, i32
  }
}

module attributes {stable_mosaic.version = 11 : i64} {
  func.func @_ffn_kernel(%arg0: i32, %arg1: i32, %arg2: memref<16x32xf32, #tpu.memory_space<vmem>>, %arg3: memref<32x64xf32, #tpu.memory_space<vmem>>, %arg4: memref<1x64xf32, #tpu.memory_space<vmem>>, %arg5: memref<64x32xf32, #tpu.memory_space<vmem>>, %arg6: memref<1x32xf32, #tpu.memory_space<vmem>>, %arg7: memref<1x32xf32, #tpu.memory_space<vmem>>, %arg8: memref<1x32xf32, #tpu.memory_space<vmem>>, %arg9: memref<16x32xf32, #tpu.memory_space<vmem>>, %arg10: memref<16x32xf32, #tpu.memory_space<vmem>>) attributes {dimension_semantics = [#tpu.dimension_semantics<parallel>, #tpu.dimension_semantics<arbitrary>], iteration_bounds = array<i64: 1, 1>, scalar_prefetch = 0 : i64, scratch_operands = 1 : i64, tpu.core_type = #tpu.core_type<tc>, window_params = [{transform_indices = @transform_0, window_bounds = array<i64: 16, 32>}, {transform_indices = @transform_1, window_bounds = array<i64: 32, 64>}, {transform_indices = @transform_2, window_bounds = array<i64: 1, 64>}, {transform_indices = @transform_3, window_bounds = array<i64: 64, 32>}, {pipeline_mode = #tpu.pipeline_mode<synchronous>, transform_indices = @transform_4, window_bounds = array<i64: 1, 32>}, {pipeline_mode = #tpu.pipeline_mode<synchronous>, transform_indices = @transform_5, window_bounds = array<i64: 1, 32>}, {pipeline_mode = #tpu.pipeline_mode<synchronous>, transform_indices = @transform_6, window_bounds = array<i64: 1, 32>}, {transform_indices = @transform_7, window_bounds = array<i64: 16, 32>}]} {
    %c0 = arith.constant 0 : index
    %c0_0 = arith.constant 0 : index
    %0 = vector.load %arg2[%c0, %c0_0] : memref<16x32xf32, #tpu.memory_space<vmem>>, vector<16x32xf32>
    %c0_1 = arith.constant 0 : index
    %c0_2 = arith.constant 0 : index
    %1 = vector.load %arg3[%c0_1, %c0_2] : memref<32x64xf32, #tpu.memory_space<vmem>>, vector<32x64xf32>
    %cst = arith.constant dense<0.000000e+00> : vector<16x64xf32>
    %2 = tpu.matmul %0, %1, %cst {dimension_numbers = #tpu.dot_dimension_numbers<[1], [0], [0], [1], [0, 0, 1, 1], [], []>} : vector<16x32xf32>, vector<32x64xf32>, vector<16x64xf32> -> vector<16x64xf32>
    %c0_3 = arith.constant 0 : index
    %c0_4 = arith.constant 0 : index
    %3 = vector.load %arg4[%c0_3, %c0_4] : memref<1x64xf32, #tpu.memory_space<vmem>>, vector<1x64xf32>
    %4 = vector.broadcast %3 : vector<1x64xf32> to vector<16x64xf32>
    %5 = arith.addf %2, %4 : vector<16x64xf32>
    %cst_5 = arith.constant 0.000000e+00 : f32
    %6 = vector.broadcast %cst_5 : f32 to vector<16x64xf32>
    %7 = arith.maximumf %5, %6 : vector<16x64xf32>
    %c0_6 = arith.constant 0 : index
    %c0_7 = arith.constant 0 : index
    %8 = vector.load %arg5[%c0_6, %c0_7] : memref<64x32xf32, #tpu.memory_space<vmem>>, vector<64x32xf32>
    %cst_8 = arith.constant dense<0.000000e+00> : vector<16x32xf32>
    %9 = tpu.matmul %7, %8, %cst_8 {dimension_numbers = #tpu.dot_dimension_numbers<[1], [0], [0], [1], [0, 0, 1, 1], [], []>} : vector<16x64xf32>, vector<64x32xf32>, vector<16x32xf32> -> vector<16x32xf32>
    %c0_i32 = arith.constant 0 : i32
    %10 = arith.cmpi eq, %arg1, %c0_i32 : i32
    %11 = arith.extui %10 : i1 to i32
    %c0_i32_9 = arith.constant 0 : i32
    %12 = arith.cmpi ne, %11, %c0_i32_9 : i32
    scf.if %12 {
      %c0_14 = arith.constant 0 : index
      %c0_15 = arith.constant 0 : index
      %19 = vector.load %arg10[%c0_14, %c0_15] : memref<16x32xf32, #tpu.memory_space<vmem>>, vector<16x32xf32>
      tpu.vector_store %arg10[%c0_14, %c0_15], %9 {strides = array<i32>} : memref<16x32xf32, #tpu.memory_space<vmem>>, vector<16x32xf32>,
    } else {
    }
    %c0_i32_10 = arith.constant 0 : i32
    %13 = arith.cmpi sgt, %arg1, %c0_i32_10 : i32
    %14 = arith.extui %13 : i1 to i32
    %c0_i32_11 = arith.constant 0 : i32
    %15 = arith.cmpi ne, %14, %c0_i32_11 : i32
    scf.if %15 {
      %c0_14 = arith.constant 0 : index
      %c0_15 = arith.constant 0 : index
      %19 = vector.load %arg10[%c0_14, %c0_15] : memref<16x32xf32, #tpu.memory_space<vmem>>, vector<16x32xf32>
      %20 = arith.addf %19, %9 : vector<16x32xf32>
      %c0_16 = arith.constant 0 : index
      %c0_17 = arith.constant 0 : index
      %21 = vector.load %arg10[%c0_16, %c0_17] : memref<16x32xf32, #tpu.memory_space<vmem>>, vector<16x32xf32>
      tpu.vector_store %arg10[%c0_16, %c0_17], %20 {strides = array<i32>} : memref<16x32xf32, #tpu.memory_space<vmem>>, vector<16x32xf32>,
    } else {
    }
    %c0_i32_12 = arith.constant 0 : i32
    %16 = arith.cmpi eq, %arg1, %c0_i32_12 : i32
    %17 = arith.extui %16 : i1 to i32
    %c0_i32_13 = arith.constant 0 : i32
    %18 = arith.cmpi ne, %17, %c0_i32_13 : i32
    scf.if %18 {
      %c0_14 = arith.constant 0 : index
      %c0_15 = arith.constant 0 : index
      %19 = vector.load %arg10[%c0_14, %c0_15] : memref<16x32xf32, #tpu.memory_space<vmem>>, vector<16x32xf32>
      %c0_16 = arith.constant 0 : index
      %c0_17 = arith.constant 0 : index
      %20 = vector.load %arg6[%c0_16, %c0_17] : memref<1x32xf32, #tpu.memory_space<vmem>>, vector<1x32xf32>
      %21 = vector.broadcast %20 : vector<1x32xf32> to vector<16x32xf32>
      %22 = arith.addf %19, %21 : vector<16x32xf32>
      %23 = arith.addf %22, %0 : vector<16x32xf32>
      %cst_18 = arith.constant dense<0.000000e+00> : vector<16xf32>
      %24 = vector.multi_reduction <add>, %23, %cst_18 [1] : vector<16x32xf32> to vector<16xf32>
      %25 = vector.shape_cast %24 : vector<16xf32> to vector<16x1xf32>
      %26 = arith.mulf %23, %23 : vector<16x32xf32>
      %cst_19 = arith.constant dense<0.000000e+00> : vector<16xf32>
      %27 = vector.multi_reduction <add>, %26, %cst_19 [1] : vector<16x32xf32> to vector<16xf32>
      %28 = vector.shape_cast %27 : vector<16xf32> to vector<16x1xf32>
      %cst_20 = arith.constant 3.125000e-02 : f32
      %29 = vector.broadcast %cst_20 : f32 to vector<16x1xf32>
      %30 = arith.mulf %25, %29 : vector<16x1xf32>
      %cst_21 = arith.constant 3.125000e-02 : f32
      %31 = vector.broadcast %cst_21 : f32 to vector<16x1xf32>
      %32 = arith.mulf %28, %31 : vector<16x1xf32>
      %33 = arith.mulf %30, %30 : vector<16x1xf32>
      %34 = arith.subf %32, %33 : vector<16x1xf32>
      %cst_22 = arith.constant 0.000000e+00 : f32
      %35 = vector.broadcast %cst_22 : f32 to vector<16x1xf32>
      %36 = arith.maximumf %34, %35 : vector<16x1xf32>
      %cst_23 = arith.constant 9.99999997E-7 : f32
      %37 = vector.broadcast %cst_23 : f32 to vector<16x1xf32>
      %38 = arith.addf %36, %37 : vector<16x1xf32>
      %39 = math.rsqrt %38 : vector<16x1xf32>
      %40 = vector.broadcast %30 : vector<16x1xf32> to vector<16x32xf32>
      %41 = arith.subf %23, %40 : vector<16x32xf32>
      %42 = vector.broadcast %39 : vector<16x1xf32> to vector<16x32xf32>
      %43 = arith.mulf %41, %42 : vector<16x32xf32>
      %c0_24 = arith.constant 0 : index
      %c0_25 = arith.constant 0 : index
      %44 = vector.load %arg7[%c0_24, %c0_25] : memref<1x32xf32, #tpu.memory_space<vmem>>, vector<1x32xf32>
      %45 = vector.broadcast %44 : vector<1x32xf32> to vector<16x32xf32>
      %46 = arith.mulf %43, %45 : vector<16x32xf32>
      %c0_26 = arith.constant 0 : index
      %c0_27 = arith.constant 0 : index
      %47 = vector.load %arg8[%c0_26, %c0_27] : memref<1x32xf32, #tpu.memory_space<vmem>>, vector<1x32xf32>
      %48 = vector.broadcast %47 : vector<1x32xf32> to vector<16x32xf32>
      %49 = arith.addf %46, %48 : vector<16x32xf32>
      %c0_28 = arith.constant 0 : index
      %c0_29 = arith.constant 0 : index
      %50 = vector.load %arg9[%c0_28, %c0_29] : memref<16x32xf32, #tpu.memory_space<vmem>>, vector<16x32xf32>
      tpu.vector_store %arg9[%c0_28, %c0_29], %49 {strides = array<i32>} : memref<16x32xf32, #tpu.memory_space<vmem>>, vector<16x32xf32>,
    } else {
    }
    return
  }
  func.func @transform_0(%arg0: i32, %arg1: i32) -> (i32, i32) {
    %c0_i32 = arith.constant 0 : i32
    %c0_i32_0 = arith.constant 0 : i32
    return %arg0, %c0_i32 : i32, i32
  }
  func.func @transform_1(%arg0: i32, %arg1: i32) -> (i32, i32) {
    %c0_i32 = arith.constant 0 : i32
    %c0_i32_0 = arith.constant 0 : i32
    return %c0_i32, %arg1 : i32, i32
  }
  func.func @transform_2(%arg0: i32, %arg1: i32) -> (i32, i32) {
    %c0_i32 = arith.constant 0 : i32
    %c0_i32_0 = arith.constant 0 : i32
    return %c0_i32, %arg1 : i32, i32
  }
  func.func @transform_3(%arg0: i32, %arg1: i32) -> (i32, i32) {
    %c0_i32 = arith.constant 0 : i32
    %c0_i32_0 = arith.constant 0 : i32
    return %arg1, %c0_i32 : i32, i32
  }
  func.func @transform_4(%arg0: i32, %arg1: i32) -> (i32, i32) {
    %c0_i32 = arith.constant 0 : i32
    %c0_i32_0 = arith.constant 0 : i32
    %c0_i32_1 = arith.constant 0 : i32
    return %c0_i32, %c0_i32_0 : i32, i32
  }
  func.func @transform_5(%arg0: i32, %arg1: i32) -> (i32, i32) {
    %c0_i32 = arith.constant 0 : i32
    %c0_i32_0 = arith.constant 0 : i32
    %c0_i32_1 = arith.constant 0 : i32
    return %c0_i32, %c0_i32_0 : i32, i32
  }
  func.func @transform_6(%arg0: i32, %arg1: i32) -> (i32, i32) {
    %c0_i32 = arith.constant 0 : i32
    %c0_i32_0 = arith.constant 0 : i32
    %c0_i32_1 = arith.constant 0 : i32
    return %c0_i32, %c0_i32_0 : i32, i32
  }
  func.func @transform_7(%arg0: i32, %arg1: i32) -> (i32, i32) {
    %c0_i32 = arith.constant 0 : i32
    %c0_i32_0 = arith.constant 0 : i32
    return %arg0, %c0_i32 : i32, i32
  }
}

</mosaic_0001>

<llo_original>
// kernel: tpu_custom_call.1
$region0: #{tpu_custom_call.1}
  #allocation0 [shape = 'u32[]', space=smem, size = 0x4, offset = 0x4, fixed_abs, tag = 'smem constant byte address 0x4 - core index']
  #allocation1 [shape = 'u32[72,128]{1,0:T(1,128)}', space=vmem, size = 0x9000, scoped, tag = 'internal scratch']
  #allocation2 [shape = 'f32[16,32]{1,0:T(8,128)}', space=vmem, size = 0x2000, scoped, tag = 'scratch operand']
  %s0 = inlined_call_operand.vmem [shape: f32[16,32], index: 0, kind: input, shape index: {}]
  %s1 = inlined_call_operand.vmem [shape: f32[32,64], index: 1, kind: input, shape index: {}]
  %s2 = inlined_call_operand.vmem [shape: f32[1,64], index: 2, kind: input, shape index: {}]
  %s3 = inlined_call_operand.vmem [shape: f32[64,32], index: 3, kind: input, shape index: {}]
  %s4 = inlined_call_operand.vmem [shape: f32[1,32], index: 4, kind: input, shape index: {}]
  %s5 = inlined_call_operand.vmem [shape: f32[1,32], index: 5, kind: input, shape index: {}]
  %s6 = inlined_call_operand.vmem [shape: f32[1,32], index: 6, kind: input, shape index: {}]
  %s7 = inlined_call_operand.hbm [shape: f32[16,32], index: 7, kind: output, shape index: {}]
  %s8 = sld [smem:[#allocation0]]
  $region50: #{tpu_custom_call.1} parent=0
    _
  %s10 = ssub.s32 1, %s8
  %s11 = scalar_select 0, %s10, %s8
  $region1: #{tpu_custom_call.1} parent=0
    #allocation3 [shape = 'u8[8192]{0}', space=vmem, size = 0x2000, scoped, tag = 'output window, operand 0, single buffered']
    #allocation4 [shape = 's32[1]{0}', space=sflag, size = 0x4, scoped, tag = 'scoped memory for tpu_custom_call.1']
    %12 = vsyncpa [#allocation4], 0
    // Predicated region
    $region2: #{tpu_custom_call.1} parent=1 // pred_check
      _
    $region3: #{tpu_custom_call.1} parent=1 // pred_check_branch
      %14 = sbr.rel (0) target = $region5
    $region4: #{tpu_custom_call.1} parent=1 // pred_region
      _
    $region5: #{tpu_custom_call.1} parent=1 // pred_fallthru
      _
    // Predicated region
    $region6: #{tpu_custom_call.1} parent=1 // pred_check
      _
    $region7: #{tpu_custom_call.1} parent=1 // pred_check_branch
      %16 = sbr.rel (0) target = $region9
    $region8: #{tpu_custom_call.1} parent=1 // pred_region
      _
    $region9: #{tpu_custom_call.1} parent=1 // pred_fallthru
      _
    // Predicated region
    $region10: #{tpu_custom_call.1} parent=1 // pred_check
      _
    $region11: #{tpu_custom_call.1} parent=1 // pred_check_branch
      %18 = sbr.rel (0) target = $region13
    $region12: #{tpu_custom_call.1} parent=1 // pred_region
      _
    $region13: #{tpu_custom_call.1} parent=1 // pred_fallthru
      _
    // Predicated region
    $region14: #{tpu_custom_call.1} parent=1 // pred_check
      _
    $region15: #{tpu_custom_call.1} parent=1 // pred_check_branch
      %20 = sbr.rel (0) target = $region17
    $region16: #{tpu_custom_call.1} parent=1 // pred_region
      _
    $region17: #{tpu_custom_call.1} parent=1 // pred_fallthru
      _
    // Predicated region
    $region18: #{tpu_custom_call.1} parent=1 // pred_check
      _
    $region19: #{tpu_custom_call.1} parent=1 // pred_check_branch
      %22 = sbr.rel (0) target = $region21
    $region20: #{tpu_custom_call.1} parent=1 // pred_region
      _
    $region21: #{tpu_custom_call.1} parent=1 // pred_fallthru
      _
    // Predicated region
    $region22: #{tpu_custom_call.1} parent=1 // pred_check
      _
    $region23: #{tpu_custom_call.1} parent=1 // pred_check_branch
      %24 = sbr.rel (0) target = $region25
    $region24: #{tpu_custom_call.1} parent=1 // pred_region
      _
    $region25: #{tpu_custom_call.1} parent=1 // pred_fallthru
      _
    // Predicated region
    $region26: #{tpu_custom_call.1} parent=1 // pred_check
      _
    $region27: #{tpu_custom_call.1} parent=1 // pred_check_branch
      %26 = sbr.rel (0) target = $region29
    $region28: #{tpu_custom_call.1} parent=1 // pred_region
      _
    $region29: #{tpu_custom_call.1} parent=1 // pred_fallthru
      _
    %v27 = vld [vmem:[%s0] sm:$0xff]
    %v28 = vld [vmem:[%s0 + $0x8] sm:$0xff]
    %v29 = vld [vmem:[%s1] sm:$0xff]
    %v30 = vld [vmem:[%s1 + $0x8] sm:$0xff]
    %v31 = vld [vmem:[%s1 + $0x10] sm:$0xff]
    %v32 = vld [vmem:[%s1 + $0x18] sm:$0xff]
    %v33 = vld [vmem:[%s2] sm:$0x1]
    %v35 = vperm.slane %v33, 0
    %vm37 = vcmask 261120
    %v39 = vsel %vm37, %v27, 0
    %v42 = vsel %vm37, %v28, 0
    %44 = vmatpush.msra.mxu0 0.0
    %45 = vmatpush.msra.mxu0 0.0
    %46 = vmatpush.msra.mxu0 0.0
    %47 = vmatpush.msra.mxu0 0.0
    %48 = vmatpush.msra.mxu0 0.0
    %49 = vmatpush.msra.mxu0 0.0
    %50 = vmatpush.msra.mxu0 0.0
    %51 = vmatpush.msra.mxu0 0.0
    %52 = vmatpush.msra.mxu0 0.0
    %53 = vmatpush.msra.mxu0 0.0
    %54 = vmatpush.msra.mxu0 0.0
    %55 = vmatpush.msra.mxu0 0.0
    %56 = vmatpush.msra.mxu0 %v32
    %57 = vmatpush.msra.mxu0 %v31
    %58 = vmatpush.msra.mxu0 %v30
    %59 = vmatpush.msra.mxu0 %v29
    %60 = vmatmul.f32.gmra.mxu0 %v39
    %v61 = vpop.f32.mrf.mxu0
    %v62 = vadd.f32 %v35, %v61
    %63 = vmatmul.f32.gmra.mxu0 %v42
    %v64 = vpop.f32.mrf.mxu0
    %v65 = vadd.f32 %v35, %v64
    %66 = vdwg.mxu0
    %v67 = vmax.f32 %v62, 0.0
    %v68 = vmax.f32 %v65, 0.0
    %v69 = vld [vmem:[%s3] sm:$0xff]
    %v70 = vld [vmem:[%s3 + $0x8] sm:$0xff]
    %v71 = vld [vmem:[%s3 + $0x10] sm:$0xff]
    %v72 = vld [vmem:[%s3 + $0x18] sm:$0xff]
    %v73 = vld [vmem:[%s3 + $0x20] sm:$0xff]
    %v74 = vld [vmem:[%s3 + $0x28] sm:$0xff]
    %v75 = vld [vmem:[%s3 + $0x30] sm:$0xff]
    %v76 = vld [vmem:[%s3 + $0x38] sm:$0xff]
    %vm77 = vcmask 523264
    %v79 = vsel %vm77, %v67, 0
    %v82 = vsel %vm77, %v68, 0
    %84 = vmatpush.msra.mxu0 0.0
    %85 = vmatpush.msra.mxu0 0.0
    %86 = vmatpush.msra.mxu0 0.0
    %87 = vmatpush.msra.mxu0 0.0
    %88 = vmatpush.msra.mxu0 0.0
    %89 = vmatpush.msra.mxu0 0.0
    %90 = vmatpush.msra.mxu0 0.0
    %91 = vmatpush.msra.mxu0 0.0
    %92 = vmatpush.msra.mxu0 %v76
    %93 = vmatpush.msra.mxu0 %v75
    %94 = vmatpush.msra.mxu0 %v74
    %95 = vmatpush.msra.mxu0 %v73
    %96 = vmatpush.msra.mxu0 %v72
    %97 = vmatpush.msra.mxu0 %v71
    %98 = vmatpush.msra.mxu0 %v70
    %99 = vmatpush.msra.mxu0 %v69
    %100 = vmatmul.f32.gmra.mxu0 %v79
    %v101 = vpop.f32.mrf.mxu0
    %v102 = vadd.f32 0.0, %v101
    %103 = vmatmul.f32.gmra.mxu0 %v82
    %v104 = vpop.f32.mrf.mxu0
    %v105 = vadd.f32 0.0, %v104
    %106 = vdwg.mxu0
    %p107 = scmp.eq.s32.totalorder 0, 0
    // Predicated region
    $region30: #{tpu_custom_call.1} parent=1 // pred_check
      %p108 = pneg %p107
    $region31: #{tpu_custom_call.1} parent=1 // pred_check_branch
      %110 = sbr.rel (%p108) target = $region33
    $region32: #{tpu_custom_call.1} parent=1 // pred_region
      %111 = vst.msk [vmem:[#allocation2] sm:$0xff] %vm37, %v102
      %112 = vst.msk [vmem:[#allocation2 + $0x8] sm:$0xff] %vm37, %v105
    $region33: #{tpu_custom_call.1} parent=1 // pred_fallthru
      _
    %p113 = scmp.gt.s32.totalorder 0, 0
    // Predicated region
    $region34: #{tpu_custom_call.1} parent=1 // pred_check
      %p114 = pneg %p113
    $region35: #{tpu_custom_call.1} parent=1 // pred_check_branch
      %116 = sbr.rel (%p114) target = $region37
    $region36: #{tpu_custom_call.1} parent=1 // pred_region
      %v117 = vld [vmem:[#allocation2] sm:$0xff]
      %v118 = vld [vmem:[#allocation2 + $0x8] sm:$0xff]
      %v119 = vadd.f32 %v117, %v102
      %v120 = vadd.f32 %v118, %v105
      %121 = vst.msk [vmem:[#allocation2] sm:$0xff] %vm37, %v119
      %122 = vst.msk [vmem:[#allocation2 + $0x8] sm:$0xff] %vm37, %v120
    $region37: #{tpu_custom_call.1} parent=1 // pred_fallthru
      _
    // Predicated region
    $region38: #{tpu_custom_call.1} parent=1 // pred_check
      %p123 = pneg %p107
    $region39: #{tpu_custom_call.1} parent=1 // pred_check_branch
      %125 = sbr.rel (%p123) target = $region41
    $region40: #{tpu_custom_call.1} parent=1 // pred_region
      %v126 = vld [vmem:[#allocation2] sm:$0xff]
      %v127 = vld [vmem:[#allocation2 + $0x8] sm:$0xff]
      %v128 = vld [vmem:[%s4] sm:$0x1]
      %v130 = vperm.slane %v128, 0
      %v132 = vadd.f32 %v126, %v130
      %v133 = vadd.f32 %v127, %v130
      %v134 = vadd.f32 %v132, %v27
      %v135 = vadd.f32 %v133, %v28
      %v136 = vsel %vm37, %v134, 0.0
      %137 = vadd.xlane.f32.xlu0 %v136
      %v138 = vpop.xlane.xlu0 %137
      %v139 = vsel %vm37, %v135, 0.0
      %140 = vadd.xlane.f32.xlu0 %v139
      %v141 = vpop.xlane.xlu0 %140
      %v142 = vmul.f32 %v134, %v134
      %v143 = vmul.f32 %v135, %v135
      %v144 = vsel %vm37, %v142, 0.0
      %145 = vadd.xlane.f32.xlu0 %v144
      %v146 = vpop.xlane.xlu0 %145
      %v147 = vsel %vm37, %v143, 0.0
      %148 = vadd.xlane.f32.xlu0 %v147
      %v149 = vpop.xlane.xlu0 %148
      %v150 = vmul.f32 %v138, 0.03125
      %v151 = vmul.f32 %v141, 0.03125
      %v152 = vmul.f32 %v146, 0.03125
      %v153 = vmul.f32 %v149, 0.03125
      %v154 = vmul.f32 %v150, %v150
      %v155 = vmul.f32 %v151, %v151
      %v156 = vsub.f32 %v152, %v154
      %v157 = vsub.f32 %v153, %v155
      %v158 = vmax.f32 %v156, 0.0
      %v159 = vmax.f32 %v157, 0.0
      %v160 = vadd.f32 %v158, 1e-06
      %v161 = vadd.f32 %v159, 1e-06
      %v162 = vrsqrt.pop %v160
      %v163 = vmul.f32 %v162, %v160
      %v164 = vmul.f32 %v163, %v162
      %v165 = vmul.f32 0.5, %v164
      %v166 = vsub.f32 1.5, %v165
      %v167 = vmul.f32 %v162, %v166
      %vm168 = vweird.f32 %v160
      %vm169 = vweird.f32 %v162
      %vm170 = vmor %vm168, %vm169
      %v171 = vsel %vm170, %v162, %v167
      %v172 = vrsqrt.pop %v161
      %v173 = vmul.f32 %v172, %v161
      %v174 = vmul.f32 %v173, %v172
      %v175 = vmul.f32 0.5, %v174
      %v176 = vsub.f32 1.5, %v175
      %v177 = vmul.f32 %v172, %v176
      %vm178 = vweird.f32 %v161
      %vm179 = vweird.f32 %v172
      %vm180 = vmor %vm178, %vm179
      %v181 = vsel %vm180, %v172, %v177
      %v182 = vsub.f32 %v134, %v150
      %v183 = vsub.f32 %v135, %v151
      %v184 = vmul.f32 %v182, %v171
      %v185 = vmul.f32 %v183, %v181
      %v186 = vld [vmem:[%s5] sm:$0x1]
      %v188 = vperm.slane %v186, 0
      %v190 = vmul.f32 %v184, %v188
      %v191 = vmul.f32 %v185, %v188
      %v192 = vld [vmem:[%s6] sm:$0x1]
      %v194 = vperm.slane %v192, 0
      %v196 = vadd.f32 %v190, %v194
      %v197 = vadd.f32 %v191, %v194
      %198 = vst.msk [vmem:[#allocation3] sm:$0xff] %vm37, %v196
      %199 = vst.msk [vmem:[#allocation3 + $0x8] sm:$0xff] %vm37, %v197
    $region41: #{tpu_custom_call.1} parent=1 // pred_fallthru
      _
    // Predicated region
    $region42: #{tpu_custom_call.1} parent=1 // pred_check
      _
    $region43: #{tpu_custom_call.1} parent=1 // pred_check_branch
      %201 = sbr.rel (0) target = $region45
    $region44: #{tpu_custom_call.1} parent=1 // pred_region
      %203 = vsyncadd [#allocation4], 0
      %s204 = sshll.u32 [#allocation3], 4
      %s205 = int_to_ptr.vmem [resolvable:$true] %s204
      %s206 = sshll.u32 %s7, 4
      %s207 = int_to_ptr.hbm [resolvable:$true] %s206
      %212 = dma.vmem_to_hbm [thread:$0]  %s205, 256, %s207, [#allocation4], 128, 128, 8
    $region45: #{tpu_custom_call.1} parent=1 // pred_fallthru
      _
    // Predicated region
    $region46: #{tpu_custom_call.1} parent=1 // pred_check
      _
    $region47: #{tpu_custom_call.1} parent=1 // pred_check_branch
      %214 = sbr.rel (0) target = $region49
    $region48: #{tpu_custom_call.1} parent=1 // pred_region
      %216 = dma.done [#allocation4], 256
    $region49: #{tpu_custom_call.1} parent=1 // pred_fallthru
      _
    %217 = vsyncpa [#allocation4], 1

// kernel: tpu_custom_call.1
$region0: #{tpu_custom_call.1}
  #allocation0 [shape = 'u32[]', space=smem, size = 0x4, offset = 0x4, fixed_abs, tag = 'smem constant byte address 0x4 - core index']
  #allocation1 [shape = 'u32[72,128]{1,0:T(1,128)}', space=vmem, size = 0x9000, scoped, tag = 'internal scratch']
  #allocation2 [shape = 'f32[16,32]{1,0:T(8,128)}', space=vmem, size = 0x2000, scoped, tag = 'scratch operand']
  %s0 = inlined_call_operand.vmem [shape: f32[16,32], index: 0, kind: input, shape index: {}]
  %s1 = inlined_call_operand.vmem [shape: f32[32,64], index: 1, kind: input, shape index: {}]
  %s2 = inlined_call_operand.vmem [shape: f32[1,64], index: 2, kind: input, shape index: {}]
  %s3 = inlined_call_operand.vmem [shape: f32[64,32], index: 3, kind: input, shape index: {}]
  %s4 = inlined_call_operand.vmem [shape: f32[1,32], index: 4, kind: input, shape index: {}]
  %s5 = inlined_call_operand.vmem [shape: f32[1,32], index: 5, kind: input, shape index: {}]
  %s6 = inlined_call_operand.vmem [shape: f32[1,32], index: 6, kind: input, shape index: {}]
  %s7 = inlined_call_operand.hbm [shape: f32[16,32], index: 7, kind: output, shape index: {}]
  %s8 = sld [smem:[#allocation0]]
  $region50: #{tpu_custom_call.1} parent=0
    _
  %s10 = ssub.s32 1, %s8
  %s11 = scalar_select 0, %s10, %s8
  $region1: #{tpu_custom_call.1} parent=0
    #allocation3 [shape = 'u8[8192]{0}', space=vmem, size = 0x2000, scoped, tag = 'output window, operand 0, single buffered']
    #allocation4 [shape = 's32[1]{0}', space=sflag, size = 0x4, scoped, tag = 'scoped memory for tpu_custom_call.1']
    %12 = vsyncpa [#allocation4], 0
    // Predicated region
    $region2: #{tpu_custom_call.1} parent=1 // pred_check
      _
    $region3: #{tpu_custom_call.1} parent=1 // pred_check_branch
      %14 = sbr.rel (0) target = $region5
    $region4: #{tpu_custom_call.1} parent=1 // pred_region
      _
    $region5: #{tpu_custom_call.1} parent=1 // pred_fallthru
      _
    // Predicated region
    $region6: #{tpu_custom_call.1} parent=1 // pred_check
      _
    $region7: #{tpu_custom_call.1} parent=1 // pred_check_branch
      %16 = sbr.rel (0) target = $region9
    $region8: #{tpu_custom_call.1} parent=1 // pred_region
      _
    $region9: #{tpu_custom_call.1} parent=1 // pred_fallthru
      _
    // Predicated region
    $region10: #{tpu_custom_call.1} parent=1 // pred_check
      _
    $region11: #{tpu_custom_call.1} parent=1 // pred_check_branch
      %18 = sbr.rel (0) target = $region13
    $region12: #{tpu_custom_call.1} parent=1 // pred_region
      _
    $region13: #{tpu_custom_call.1} parent=1 // pred_fallthru
      _
    // Predicated region
    $region14: #{tpu_custom_call.1} parent=1 // pred_check
      _
    $region15: #{tpu_custom_call.1} parent=1 // pred_check_branch
      %20 = sbr.rel (0) target = $region17
    $region16: #{tpu_custom_call.1} parent=1 // pred_region
      _
    $region17: #{tpu_custom_call.1} parent=1 // pred_fallthru
      _
    // Predicated region
    $region18: #{tpu_custom_call.1} parent=1 // pred_check
      _
    $region19: #{tpu_custom_call.1} parent=1 // pred_check_branch
      %22 = sbr.rel (0) target = $region21
    $region20: #{tpu_custom_call.1} parent=1 // pred_region
      _
    $region21: #{tpu_custom_call.1} parent=1 // pred_fallthru
      _
    // Predicated region
    $region22: #{tpu_custom_call.1} parent=1 // pred_check
      _
    $region23: #{tpu_custom_call.1} parent=1 // pred_check_branch
      %24 = sbr.rel (0) target = $region25
    $region24: #{tpu_custom_call.1} parent=1 // pred_region
      _
    $region25: #{tpu_custom_call.1} parent=1 // pred_fallthru
      _
    // Predicated region
    $region26: #{tpu_custom_call.1} parent=1 // pred_check
      _
    $region27: #{tpu_custom_call.1} parent=1 // pred_check_branch
      %26 = sbr.rel (0) target = $region29
    $region28: #{tpu_custom_call.1} parent=1 // pred_region
      _
    $region29: #{tpu_custom_call.1} parent=1 // pred_fallthru
      _
    %v27 = vld [vmem:[%s0] sm:$0xff]
    %v28 = vld [vmem:[%s0 + $0x8] sm:$0xff]
    %v29 = vld [vmem:[%s1] sm:$0xff]
    %v30 = vld [vmem:[%s1 + $0x8] sm:$0xff]
    %v31 = vld [vmem:[%s1 + $0x10] sm:$0xff]
    %v32 = vld [vmem:[%s1 + $0x18] sm:$0xff]
    %v33 = vld [vmem:[%s2] sm:$0x1]
    %v35 = vperm.slane %v33, 0
    %vm37 = vcmask 261120
    %v39 = vsel %vm37, %v27, 0
    %v42 = vsel %vm37, %v28, 0
    %44 = vmatpush.msra.mxu0 0.0
    %45 = vmatpush.msra.mxu0 0.0
    %46 = vmatpush.msra.mxu0 0.0
    %47 = vmatpush.msra.mxu0 0.0
    %48 = vmatpush.msra.mxu0 0.0
    %49 = vmatpush.msra.mxu0 0.0
    %50 = vmatpush.msra.mxu0 0.0
    %51 = vmatpush.msra.mxu0 0.0
    %52 = vmatpush.msra.mxu0 0.0
    %53 = vmatpush.msra.mxu0 0.0
    %54 = vmatpush.msra.mxu0 0.0
    %55 = vmatpush.msra.mxu0 0.0
    %56 = vmatpush.msra.mxu0 %v32
    %57 = vmatpush.msra.mxu0 %v31
    %58 = vmatpush.msra.mxu0 %v30
    %59 = vmatpush.msra.mxu0 %v29
    %60 = vmatmul.f32.gmra.mxu0 %v39
    %v61 = vpop.f32.mrf.mxu0
    %v62 = vadd.f32 %v35, %v61
    %63 = vmatmul.f32.gmra.mxu0 %v42
    %v64 = vpop.f32.mrf.mxu0
    %v65 = vadd.f32 %v35, %v64
    %66 = vdwg.mxu0
    %v67 = vmax.f32 %v62, 0.0
    %v68 = vmax.f32 %v65, 0.0
    %v69 = vld [vmem:[%s3] sm:$0xff]
    %v70 = vld [vmem:[%s3 + $0x8] sm:$0xff]
    %v71 = vld [vmem:[%s3 + $0x10] sm:$0xff]
    %v72 = vld [vmem:[%s3 + $0x18] sm:$0xff]
    %v73 = vld [vmem:[%s3 + $0x20] sm:$0xff]
    %v74 = vld [vmem:[%s3 + $0x28] sm:$0xff]
    %v75 = vld [vmem:[%s3 + $0x30] sm:$0xff]
    %v76 = vld [vmem:[%s3 + $0x38] sm:$0xff]
    %vm77 = vcmask 523264
    %v79 = vsel %vm77, %v67, 0
    %v82 = vsel %vm77, %v68, 0
    %84 = vmatpush.msra.mxu0 0.0
    %85 = vmatpush.msra.mxu0 0.0
    %86 = vmatpush.msra.mxu0 0.0
    %87 = vmatpush.msra.mxu0 0.0
    %88 = vmatpush.msra.mxu0 0.0
    %89 = vmatpush.msra.mxu0 0.0
    %90 = vmatpush.msra.mxu0 0.0
    %91 = vmatpush.msra.mxu0 0.0
    %92 = vmatpush.msra.mxu0 %v76
    %93 = vmatpush.msra.mxu0 %v75
    %94 = vmatpush.msra.mxu0 %v74
    %95 = vmatpush.msra.mxu0 %v73
    %96 = vmatpush.msra.mxu0 %v72
    %97 = vmatpush.msra.mxu0 %v71
    %98 = vmatpush.msra.mxu0 %v70
    %99 = vmatpush.msra.mxu0 %v69
    %100 = vmatmul.f32.gmra.mxu0 %v79
    %v101 = vpop.f32.mrf.mxu0
    %v102 = vadd.f32 0.0, %v101
    %103 = vmatmul.f32.gmra.mxu0 %v82
    %v104 = vpop.f32.mrf.mxu0
    %v105 = vadd.f32 0.0, %v104
    %106 = vdwg.mxu0
    %p107 = scmp.eq.s32.totalorder 0, 0
    // Predicated region
    $region30: #{tpu_custom_call.1} parent=1 // pred_check
      %p108 = pneg %p107
    $region31: #{tpu_custom_call.1} parent=1 // pred_check_branch
      %110 = sbr.rel (%p108) target = $region33
    $region32: #{tpu_custom_call.1} parent=1 // pred_region
      %111 = vst.msk [vmem:[#allocation2] sm:$0xff] %vm37, %v102
      %112 = vst.msk [vmem:[#allocation2 + $0x8] sm:$0xff] %vm37, %v105
    $region33: #{tpu_custom_call.1} parent=1 // pred_fallthru
      _
    %p113 = scmp.gt.s32.totalorder 0, 0
    // Predicated region
    $region34: #{tpu_custom_call.1} parent=1 // pred_check
      %p114 = pneg %p113
    $region35: #{tpu_custom_call.1} parent=1 // pred_check_branch
      %116 = sbr.rel (%p114) target = $region37
    $region36: #{tpu_custom_call.1} parent=1 // pred_region
      %v117 = vld [vmem:[#allocation2] sm:$0xff]
      %v118 = vld [vmem:[#allocation2 + $0x8] sm:$0xff]
      %v119 = vadd.f32 %v117, %v102
      %v120 = vadd.f32 %v118, %v105
      %121 = vst.msk [vmem:[#allocation2] sm:$0xff] %vm37, %v119
      %122 = vst.msk [vmem:[#allocation2 + $0x8] sm:$0xff] %vm37, %v120
    $region37: #{tpu_custom_call.1} parent=1 // pred_fallthru
      _
    // Predicated region
    $region38: #{tpu_custom_call.1} parent=1 // pred_check
      %p123 = pneg %p107
    $region39: #{tpu_custom_call.1} parent=1 // pred_check_branch
      %125 = sbr.rel (%p123) target = $region41
    $region40: #{tpu_custom_call.1} parent=1 // pred_region
      %v126 = vld [vmem:[#allocation2] sm:$0xff]
      %v127 = vld [vmem:[#allocation2 + $0x8] sm:$0xff]
      %v128 = vld [vmem:[%s4] sm:$0x1]
      %v130 = vperm.slane %v128, 0
      %v132 = vadd.f32 %v126, %v130
      %v133 = vadd.f32 %v127, %v130
      %v134 = vadd.f32 %v132, %v27
      %v135 = vadd.f32 %v133, %v28
      %v136 = vsel %vm37, %v134, 0.0
      %137 = vadd.xlane.f32.xlu0 %v136
      %v138 = vpop.xlane.xlu0 %137
      %v139 = vsel %vm37, %v135, 0.0
      %140 = vadd.xlane.f32.xlu0 %v139
      %v141 = vpop.xlane.xlu0 %140
      %v142 = vmul.f32 %v134, %v134
      %v143 = vmul.f32 %v135, %v135
      %v144 = vsel %vm37, %v142, 0.0
      %145 = vadd.xlane.f32.xlu0 %v144
      %v146 = vpop.xlane.xlu0 %145
      %v147 = vsel %vm37, %v143, 0.0
      %148 = vadd.xlane.f32.xlu0 %v147
      %v149 = vpop.xlane.xlu0 %148
      %v150 = vmul.f32 %v138, 0.03125
      %v151 = vmul.f32 %v141, 0.03125
      %v152 = vmul.f32 %v146, 0.03125
      %v153 = vmul.f32 %v149, 0.03125
      %v154 = vmul.f32 %v150, %v150
      %v155 = vmul.f32 %v151, %v151
      %v156 = vsub.f32 %v152, %v154
      %v157 = vsub.f32 %v153, %v155
      %v158 = vmax.f32 %v156, 0.0
      %v159 = vmax.f32 %v157, 0.0
      %v160 = vadd.f32 %v158, 1e-06
      %v161 = vadd.f32 %v159, 1e-06
      %v162 = vrsqrt.pop %v160
      %v163 = vmul.f32 %v162, %v160
      %v164 = vmul.f32 %v163, %v162
      %v165 = vmul.f32 0.5, %v164
      %v166 = vsub.f32 1.5, %v165
      %v167 = vmul.f32 %v162, %v166
      %vm168 = vweird.f32 %v160
      %vm169 = vweird.f32 %v162
      %vm170 = vmor %vm168, %vm169
      %v171 = vsel %vm170, %v162, %v167
      %v172 = vrsqrt.pop %v161
      %v173 = vmul.f32 %v172, %v161
      %v174 = vmul.f32 %v173, %v172
      %v175 = vmul.f32 0.5, %v174
      %v176 = vsub.f32 1.5, %v175
      %v177 = vmul.f32 %v172, %v176
      %vm178 = vweird.f32 %v161
      %vm179 = vweird.f32 %v172
      %vm180 = vmor %vm178, %vm179
      %v181 = vsel %vm180, %v172, %v177
      %v182 = vsub.f32 %v134, %v150
      %v183 = vsub.f32 %v135, %v151
      %v184 = vmul.f32 %v182, %v171
      %v185 = vmul.f32 %v183, %v181
      %v186 = vld [vmem:[%s5] sm:$0x1]
      %v188 = vperm.slane %v186, 0
      %v190 = vmul.f32 %v184, %v188
      %v191 = vmul.f32 %v185, %v188
      %v192 = vld [vmem:[%s6] sm:$0x1]
      %v194 = vperm.slane %v192, 0
      %v196 = vadd.f32 %v190, %v194
      %v197 = vadd.f32 %v191, %v194
      %198 = vst.msk [vmem:[#allocation3] sm:$0xff] %vm37, %v196
      %199 = vst.msk [vmem:[#allocation3 + $0x8] sm:$0xff] %vm37, %v197
    $region41: #{tpu_custom_call.1} parent=1 // pred_fallthru
      _
    // Predicated region
    $region42: #{tpu_custom_call.1} parent=1 // pred_check
      _
    $region43: #{tpu_custom_call.1} parent=1 // pred_check_branch
      %201 = sbr.rel (0) target = $region45
    $region44: #{tpu_custom_call.1} parent=1 // pred_region
      %203 = vsyncadd [#allocation4], 0
      %s204 = sshll.u32 [#allocation3], 4
      %s205 = int_to_ptr.vmem [resolvable:$true] %s204
      %s206 = sshll.u32 %s7, 4
      %s207 = int_to_ptr.hbm [resolvable:$true] %s206
      %212 = dma.vmem_to_hbm [thread:$0]  %s205, 256, %s207, [#allocation4], 128, 128, 8
    $region45: #{tpu_custom_call.1} parent=1 // pred_fallthru
      _
    // Predicated region
    $region46: #{tpu_custom_call.1} parent=1 // pred_check
      _
    $region47: #{tpu_custom_call.1} parent=1 // pred_check_branch
      %214 = sbr.rel (0) target = $region49
    $region48: #{tpu_custom_call.1} parent=1 // pred_region
      %216 = dma.done [#allocation4], 256
    $region49: #{tpu_custom_call.1} parent=1 // pred_fallthru
      _
    %217 = vsyncpa [#allocation4], 1

</llo_original>
